<compile_context>
chip_gen: v5e
topology: v5e:2x2
jax: 0.10.0
libtpu: 0.0.40
codegen_flags: <defaults>
</compile_context>

<pallas_src>
import jax
import jax.numpy as jnp
from jax.experimental import pallas as pl
from jax.experimental.pallas import tpu as pltpu

EPS = 1e-6


# ------------------------------- kernels --------------------------------------

def grn_stats_kernel(x_ref, nx_ref):
    """Pass 1: accumulate sum-of-squares over the sequence axis, then finalize Nx.

    x_ref:  (1, T_TILE, C) block of the input
    nx_ref: (1, 1, C) f32 output block, resident across the reduction axis
            (holds the running sum of squares, finalized to Nx on the last step)
    """
    t = pl.program_id(1)

    @pl.when(t == 0)
    def _init():
        nx_ref[...] = jnp.zeros_like(nx_ref)

    xb = x_ref[0].astype(jnp.float32)                     # (T_TILE, C)
    ssq = jnp.sum(xb * xb, axis=0, keepdims=True)         # (1, C)
    nx_ref[...] += ssq[None]                              # (1, 1, C)

    @pl.when(t == pl.num_programs(1) - 1)
    def _finalize():
        gx = jnp.sqrt(nx_ref[...])                        # (1, 1, C)  = ||x||_2
        mean = jnp.mean(gx, axis=-1, keepdims=True)       # (1, 1, 1)  cross-lane reduce
        nx_ref[...] = gx / (mean + EPS)                   # Nx


def grn_apply_kernel(x_ref, nx_ref, gamma_ref, beta_ref, o_ref):
    """Pass 2: y = gamma * (x * Nx) + beta + x, pointwise over (T_TILE, C) tiles."""
    x = x_ref[0].astype(jnp.float32)                      # (T_TILE, C)
    nx = nx_ref[0].astype(jnp.float32)                    # (1, C)
    g = gamma_ref[0].astype(jnp.float32)                  # (1, C)
    b = beta_ref[0].astype(jnp.float32)                   # (1, C)
    o_ref[0] = (g * (x * nx) + b + x).astype(o_ref.dtype)


# ------------------------------- wrapper ---------------------------------------

def _pick_t_tile(T, C, max_block_bytes=4 << 20):
    """Largest time-tile (multiple of 8, dividing T) whose f32 block fits the budget."""
    if T * C * 4 <= max_block_bytes:
        return T
    for t in (2048, 1024, 512, 256, 128, 64, 32, 16, 8):
        if t <= T and T % t == 0 and t * C * 4 <= max_block_bytes:
            return t
    return T  # fallback: whole sequence per grid step


def grn_forward(x, gamma, beta, *, t_tile=None):
    """GRN forward.  x: (B, N, C) channels-last; gamma, beta: (1, 1, C)."""
    B, T, C = x.shape
    if t_tile is None:
        t_tile = _pick_t_tile(T, C)
    assert T % t_tile == 0
    n_t = T // t_tile

    # Pass 1: per-(batch, channel) L2 norm over the sequence, normalized across
    # channels -> Nx of shape (B, 1, C), f32.
    nx = pl.pallas_call(
        grn_stats_kernel,
        out_shape=jax.ShapeDtypeStruct((B, 1, C), jnp.float32),
        grid_spec=pltpu.PrefetchScalarGridSpec(
            num_scalar_prefetch=0,
            grid=(B, n_t),
            in_specs=[pl.BlockSpec((1, t_tile, C), lambda b, t: (b, t, 0))],
            out_specs=pl.BlockSpec((1, 1, C), lambda b, t: (b, 0, 0)),
        ),
        compiler_params=pltpu.CompilerParams(
            dimension_semantics=("parallel", "arbitrary")),
    )(x)

    # Pass 2: pointwise application, both grid axes parallel (megacore-friendly).
    out = pl.pallas_call(
        grn_apply_kernel,
        out_shape=jax.ShapeDtypeStruct((B, T, C), x.dtype),
        grid_spec=pltpu.PrefetchScalarGridSpec(
            num_scalar_prefetch=0,
            grid=(B, n_t),
            in_specs=[
                pl.BlockSpec((1, t_tile, C), lambda b, t: (b, t, 0)),
                pl.BlockSpec((1, 1, C), lambda b, t: (b, 0, 0)),
                pl.BlockSpec((1, 1, C), lambda b, t: (0, 0, 0)),
                pl.BlockSpec((1, 1, C), lambda b, t: (0, 0, 0)),
            ],
            out_specs=pl.BlockSpec((1, t_tile, C), lambda b, t: (b, t, 0)),
        ),
        compiler_params=pltpu.CompilerParams(
            dimension_semantics=("parallel", "parallel")),
    )(x, nx, gamma, beta)
    return out


# --------------------------- pure-JAX reference --------------------------------

def grn_ref(x, gamma, beta):
    gx = jnp.sqrt(jnp.sum(x.astype(jnp.float32) ** 2, axis=1, keepdims=True))  # (B,1,C)
    nx = gx / (jnp.mean(gx, axis=-1, keepdims=True) + EPS)                      # (B,1,C)
    return (gamma * (x * nx) + beta + x).astype(x.dtype)


# ------------------------------------ main --------------------------------------

if __name__ == "__main__":
    B, N, C = 2, 16, 32   # (batch, sequence, dim) — channels-last like the module
    key = jax.random.PRNGKey(0)
    kx, kg, kb = jax.random.split(key, 3)
    x = jax.random.normal(kx, (B, N, C), jnp.float32)
    # torch init is zeros (output == x); use random params so the test is meaningful.
    gamma = jax.random.normal(kg, (1, 1, C), jnp.float32) * 0.1
    beta = jax.random.normal(kb, (1, 1, C), jnp.float32) * 0.1

    # Force a small time-tile so the multi-step reduction path is exercised.
    out = grn_forward(x, gamma, beta, t_tile=8)
    out = jax.block_until_ready(out)

    ref = grn_ref(x, gamma, beta)
    assert out.shape == (B, N, C)
    assert jnp.allclose(out, ref, rtol=1e-5, atol=1e-5), (
        f"max err {jnp.max(jnp.abs(out - ref))}")

    print("KERNEL_OK")
</pallas_src>

<mosaic_0001>
module attributes {stable_mosaic.version = 11 : i64} {
  func.func @grn_stats_kernel(%arg0: i32, %arg1: i32, %arg2: memref<1x8x32xf32, #tpu.memory_space<vmem>>, %arg3: memref<1x1x32xf32, #tpu.memory_space<vmem>>) attributes {dimension_semantics = [#tpu.dimension_semantics<parallel>, #tpu.dimension_semantics<arbitrary>], iteration_bounds = array<i64: 2, 2>, scalar_prefetch = 0 : i64, scratch_operands = 0 : i64, tpu.core_type = #tpu.core_type<tc>, window_params = [{transform_indices = @transform_0, window_bounds = array<i64: 1, 8, 32>}, {transform_indices = @transform_1, window_bounds = array<i64: 1, 1, 32>}]} {
    %c0_i32 = arith.constant 0 : i32
    %0 = arith.cmpi eq, %arg1, %c0_i32 : i32
    %1 = arith.extui %0 : i1 to i32
    %c0_i32_0 = arith.constant 0 : i32
    %2 = arith.cmpi ne, %1, %c0_i32_0 : i32
    scf.if %2 {
      %cst_10 = arith.constant 0.000000e+00 : f32
      %15 = vector.broadcast %cst_10 : f32 to vector<1x1x32xf32>
      %c0_11 = arith.constant 0 : index
      %c0_12 = arith.constant 0 : index
      %c0_13 = arith.constant 0 : index
      %16 = vector.load %arg3[%c0_11, %c0_12, %c0_13] : memref<1x1x32xf32, #tpu.memory_space<vmem>>, vector<1x1x32xf32>
      tpu.vector_store %arg3[%c0_11, %c0_12, %c0_13], %15 {strides = array<i32>} : memref<1x1x32xf32, #tpu.memory_space<vmem>>, vector<1x1x32xf32>,
    } else {
    }
    %c0 = arith.constant 0 : index
    %c0_1 = arith.constant 0 : index
    %c0_2 = arith.constant 0 : index
    %3 = vector.load %arg2[%c0, %c0_1, %c0_2] : memref<1x8x32xf32, #tpu.memory_space<vmem>>, vector<1x8x32xf32>
    %4 = vector.shape_cast %3 : vector<1x8x32xf32> to vector<8x32xf32>
    %5 = arith.mulf %4, %4 : vector<8x32xf32>
    %cst = arith.constant dense<0.000000e+00> : vector<32xf32>
    %6 = vector.multi_reduction <add>, %5, %cst [0] : vector<8x32xf32> to vector<32xf32>
    %7 = vector.shape_cast %6 : vector<32xf32> to vector<1x32xf32>
    %c0_3 = arith.constant 0 : index
    %c0_4 = arith.constant 0 : index
    %c0_5 = arith.constant 0 : index
    %8 = vector.load %arg3[%c0_3, %c0_4, %c0_5] : memref<1x1x32xf32, #tpu.memory_space<vmem>>, vector<1x1x32xf32>
    %9 = vector.shape_cast %7 : vector<1x32xf32> to vector<1x1x32xf32>
    %10 = arith.addf %8, %9 : vector<1x1x32xf32>
    %c0_6 = arith.constant 0 : index
    %c0_7 = arith.constant 0 : index
    %c0_8 = arith.constant 0 : index
    %11 = vector.load %arg3[%c0_6, %c0_7, %c0_8] : memref<1x1x32xf32, #tpu.memory_space<vmem>>, vector<1x1x32xf32>
    tpu.vector_store %arg3[%c0_6, %c0_7, %c0_8], %10 {strides = array<i32>} : memref<1x1x32xf32, #tpu.memory_space<vmem>>, vector<1x1x32xf32>,
    %c1_i32 = arith.constant 1 : i32
    %12 = arith.cmpi eq, %arg1, %c1_i32 : i32
    %13 = arith.extui %12 : i1 to i32
    %c0_i32_9 = arith.constant 0 : i32
    %14 = arith.cmpi ne, %13, %c0_i32_9 : i32
    scf.if %14 {
      %c0_10 = arith.constant 0 : index
      %c0_11 = arith.constant 0 : index
      %c0_12 = arith.constant 0 : index
      %15 = vector.load %arg3[%c0_10, %c0_11, %c0_12] : memref<1x1x32xf32, #tpu.memory_space<vmem>>, vector<1x1x32xf32>
      %16 = math.sqrt %15 : vector<1x1x32xf32>
      %cst_13 = arith.constant dense<0.000000e+00> : vector<1x1xf32>
      %17 = vector.multi_reduction <add>, %16, %cst_13 [2] : vector<1x1x32xf32> to vector<1x1xf32>
      %18 = vector.shape_cast %17 : vector<1x1xf32> to vector<1x1x1xf32>
      %cst_14 = arith.constant 3.200000e+01 : f32
      %19 = vector.broadcast %cst_14 : f32 to vector<1x1x1xf32>
      %20 = arith.divf %18, %19 : vector<1x1x1xf32>
      %cst_15 = arith.constant 9.99999997E-7 : f32
      %21 = vector.broadcast %cst_15 : f32 to vector<1x1x1xf32>
      %22 = arith.addf %20, %21 : vector<1x1x1xf32>
      %23 = vector.broadcast %22 : vector<1x1x1xf32> to vector<1x1x32xf32>
      %24 = arith.divf %16, %23 : vector<1x1x32xf32>
      %c0_16 = arith.constant 0 : index
      %c0_17 = arith.constant 0 : index
      %c0_18 = arith.constant 0 : index
      %25 = vector.load %arg3[%c0_16, %c0_17, %c0_18] : memref<1x1x32xf32, #tpu.memory_space<vmem>>, vector<1x1x32xf32>
      tpu.vector_store %arg3[%c0_16, %c0_17, %c0_18], %24 {strides = array<i32>} : memref<1x1x32xf32, #tpu.memory_space<vmem>>, vector<1x1x32xf32>,
    } else {
    }
    return
  }
  func.func @transform_0(%arg0: i32, %arg1: i32) -> (i32, i32, i32) {
    %c0_i32 = arith.constant 0 : i32
    %c0_i32_0 = arith.constant 0 : i32
    return %arg0, %arg1, %c0_i32 : i32, i32, i32
  }
  func.func @transform_1(%arg0: i32, %arg1: i32) -> (i32, i32, i32) {
    %c0_i32 = arith.constant 0 : i32
    %c0_i32_0 = arith.constant 0 : i32
    %c0_i32_1 = arith.constant 0 : i32
    return %arg0, %c0_i32, %c0_i32_0 : i32, i32, i32
  }
}

</mosaic_0001>

<llo_original>
// kernel: tpu_custom_call.1
$region0: #{tpu_custom_call.1}
  #allocation0 [shape = 'u32[]', space=smem, size = 0x4, offset = 0x4, fixed_abs, tag = 'smem constant byte address 0x4 - core index']
  #allocation1 [shape = 'u32[72,128]{1,0:T(1,128)}', space=vmem, size = 0x9000, scoped, tag = 'internal scratch']
  %s0 = inlined_call_operand.hbm [shape: f32[2,16,32], index: 0, kind: input, shape index: {}]
  %s1 = inlined_call_operand.hbm [shape: f32[2,1,32], index: 1, kind: output, shape index: {}]
  %s2 = sld [smem:[#allocation0]]
  $region49: #{tpu_custom_call.1} parent=0
    _
  %s4 = ssub.s32 1, %s2
  %s5 = scalar_select 0, %s4, %s2
  $region1: #{tpu_custom_call.1} parent=0
    #allocation2 [shape = 'u8[8192]{0}', space=vmem, size = 0x2000, scoped, tag = 'input window, operand 0']
    #allocation3 [shape = 's32[2]{0}', space=sflag, size = 0x8, scoped, tag = 'scoped memory for tpu_custom_call.1']
    #allocation4 [shape = 's32[2]{0}', space=sflag, size = 0x8, scoped, tag = 'scoped memory for tpu_custom_call.1']
    #allocation5 [shape = 'u8[1024]{0}', space=vmem, size = 0x400, scoped, tag = 'output window, operand 0']
    %6 = vsyncpa [#allocation3], 0
    %s7 = scalar_lea.sflag [#allocation3], 1
    %8 = vsyncpa %s7, 0
    %9 = vsyncpa [#allocation4], 0
    %s10 = scalar_lea.sflag [#allocation4], 1
    %11 = vsyncpa %s10, 0
    loop: start=0, step=1, limit=6
    $region2: #{tpu_custom_call.1} parent=1 // loop_pre_header
      _
    $region3: #{tpu_custom_call.1} parent=1 // loop_header
      %s13 = sphi 0, %s17
      %p14 = scmp.ge.s32.totalorder %s13, 6
      %s20 = sphi 0, %s32
      %s21 = sphi 0, %s28
      %s22 = sphi 0, %s20
      %s23 = sphi 0, %s21
      %s24 = sphi 0, %s22
      %s25 = sphi 0, %s23
      %s37 = sphi 0, %s39
      %s40 = sphi 0, %s37
      %s41 = sphi 0, %s40
      %s57 = sphi 0, %s41
      %s63 = sphi 0, %s65
      %s66 = sphi 0, %s63
      %s67 = sphi 0, %s66
      %s83 = sphi 0, %s67
    $region4: #{tpu_custom_call.1} parent=1 // loop_header_branch
      %16 = sbr.rel (%p14) target = $region8
    $region5: #{tpu_custom_call.1} parent=1 // loop_body
      %s18 = ssub.s32 %s13, 1
      %s19 = ssub.s32 %s13, 2
      %s26 = sadd.s32 1, %s21
      %p27 = scmp.ge.s32.totalorder %s26, 2
      %s28 = scalar_select %p27, 0, %s26
      %s29 = sadd.s32 1, %s20
      %s30 = scalar_select %p27, %s29, %s20
      %p31 = scmp.ge.s32.totalorder %s30, 2
      %s32 = scalar_select %p31, 0, %s30
      %s33 = ssub.s32 %s20, %s32
      %s34 = ssub.s32 %s21, %s28
      %s35 = sor.u32 %s33, %s34
      %p36 = scmp.eq.s32.totalorder %s35, 0
      %s38 = sadd.s32 %s37, 1
      %s39 = scalar_select %p36, %s37, %s38
      %p42 = pneg %p36
      %p43 = scmp.eq.s32.totalorder %s13, 3
      %p44 = por %p42, %p43
      %p45 = scmp.ne.s32.totalorder %s37, %s40
      %p46 = scmp.eq.s32.totalorder %s13, 0
      %p47 = por %p45, %p46
      %p48 = scmp.ne.s32.totalorder %s37, %s40
      %p49 = scmp.eq.s32.totalorder %s18, 3
      %p50 = por %p48, %p49
      %p51 = scmp.ne.s32.totalorder %s40, %s41
      %p52 = scmp.eq.s32.totalorder %s18, 0
      %p53 = por %p51, %p52
      %p54 = scmp.ne.s32.totalorder %s40, %s41
      %p55 = scmp.eq.s32.totalorder %s19, 3
      %p56 = por %p54, %p55
      %p58 = scmp.ne.s32.totalorder %s41, %s57
      %p59 = scmp.eq.s32.totalorder %s19, 0
      %p60 = por %p58, %p59
      %s61 = ssub.s32 %s20, %s32
      %p62 = scmp.eq.s32.totalorder %s61, 0
      %s64 = sadd.s32 %s63, 1
      %s65 = scalar_select %p62, %s63, %s64
      %p68 = pneg %p62
      %p69 = scmp.eq.s32.totalorder %s13, 3
      %p70 = por %p68, %p69
      %p71 = scmp.ne.s32.totalorder %s63, %s66
      %p72 = scmp.eq.s32.totalorder %s13, 0
      %p73 = por %p71, %p72
      %p74 = scmp.ne.s32.totalorder %s63, %s66
      %p75 = scmp.eq.s32.totalorder %s18, 3
      %p76 = por %p74, %p75
      %p77 = scmp.ne.s32.totalorder %s66, %s67
      %p78 = scmp.eq.s32.totalorder %s18, 0
      %p79 = por %p77, %p78
      %p80 = scmp.ne.s32.totalorder %s66, %s67
      %p81 = scmp.eq.s32.totalorder %s19, 3
      %p82 = por %p80, %p81
      %p84 = scmp.ne.s32.totalorder %s67, %s83
      %p85 = scmp.eq.s32.totalorder %s19, 0
      %p86 = por %p84, %p85
      %p87 = scmp.le.s32.totalorder 1, %s13
      %p88 = scmp.lt.s32.totalorder %s13, 5
      %p89 = pnand %p87, %p88
      %p90 = pneg %p89
      // Predicated region
      $region9: #{tpu_custom_call.1} parent=5 // pred_check
        _
      $region10: #{tpu_custom_call.1} parent=5 // pred_check_branch
        %92 = sbr.rel (%p89) target = $region12
      $region11: #{tpu_custom_call.1} parent=5 // pred_region
        %s93 = ssub.s32 %s13, 1
      $region12: #{tpu_custom_call.1} parent=5 // pred_fallthru
        _
      %p94 = scmp.lt.s32.totalorder %s13, 4
      // Predicated region
      $region13: #{tpu_custom_call.1} parent=5 // pred_check
        %p95 = pneg %p94
      $region14: #{tpu_custom_call.1} parent=5 // pred_check_branch
        %97 = sbr.rel (%p95) target = $region16
      $region15: #{tpu_custom_call.1} parent=5 // pred_region
        // Predicated region
        $region17: #{tpu_custom_call.1} parent=15 // pred_check
          %p98 = pneg %p47
        $region18: #{tpu_custom_call.1} parent=15 // pred_check_branch
          %100 = sbr.rel (%p98) target = $region20
        $region19: #{tpu_custom_call.1} parent=15 // pred_region
          %s101 = sand.u32 %s37, 1
          %s102 = scalar_lea.sflag [#allocation3], %s101
          %s103 = sand.u32 %s37, 1
          %s104 = smul.addr %s103, 8
          %s105 = scalar_lea.vmem [#allocation2], %s104
          %107 = vsyncadd %s102, 0
          %s108 = smul.addr %s20, 2
          %s109 = sadd.s32 %s21, %s108
          %s110 = smul.addr %s109, 8
          %s111 = scalar_lea.hbm %s0, %s110
          %s113 = sshll.u32 %s111, 4
          %s114 = int_to_ptr.hbm [resolvable:$true] %s113
          %s115 = sshll.u32 %s105, 4
          %s116 = int_to_ptr.vmem [resolvable:$true] %s115
          %118 = dma.hbm_to_vmem [thread:$0]  %s114, 128, %s116, %s102
        $region20: #{tpu_custom_call.1} parent=15 // pred_fallthru
          _
      $region16: #{tpu_custom_call.1} parent=5 // pred_fallthru
        _
      %p119 = scmp.le.s32.totalorder 1, %s13
      %p120 = scmp.lt.s32.totalorder %s13, 5
      %p121 = pnand %p119, %p120
      %p122 = pneg %p121
      // Predicated region
      $region21: #{tpu_custom_call.1} parent=5 // pred_check
        _
      $region22: #{tpu_custom_call.1} parent=5 // pred_check_branch
        %124 = sbr.rel (%p121) target = $region24
      $region23: #{tpu_custom_call.1} parent=5 // pred_region
        %s125 = ssub.s32 %s13, 1
        %s126 = sand.u32 %s40, 1
        %s127 = scalar_lea.sflag [#allocation3], %s126
        %s128 = sand.u32 %s40, 1
        %s129 = smul.addr %s128, 8
        %s130 = scalar_lea.vmem [#allocation2], %s129
        // Predicated region
        $region25: #{tpu_custom_call.1} parent=23 // pred_check
          %p131 = pneg %p53
        $region26: #{tpu_custom_call.1} parent=23 // pred_check_branch
          %133 = sbr.rel (%p131) target = $region28
        $region27: #{tpu_custom_call.1} parent=23 // pred_region
          %135 = dma.done %s127, 128
        $region28: #{tpu_custom_call.1} parent=23 // pred_fallthru
          _
        %s136 = sand.u32 %s40, 1
        %s137 = scalar_lea.sflag [#allocation3], %s136
        %s138 = sand.u32 %s40, 1
        %s139 = smul.addr %s138, 8
        %s140 = scalar_lea.vmem [#allocation2], %s139
        %p141 = pneg %p53
        %p142 = pneg %p50
        %p143 = pneg %p79
        %p144 = pneg %p76
        %s145 = sand.u32 %s66, 1
        %s146 = scalar_lea.sflag [#allocation4], %s145
        %s147 = sand.u32 %s66, 1
        %s148 = scalar_lea.vmem [#allocation5], %s147
        %p149 = scmp.eq.s32.totalorder %s23, 0
        // Predicated region
        $region29: #{tpu_custom_call.1} parent=23 // pred_check
          %p150 = pneg %p149
        $region30: #{tpu_custom_call.1} parent=23 // pred_check_branch
          %152 = sbr.rel (%p150) target = $region32
        $region31: #{tpu_custom_call.1} parent=23 // pred_region
          %vm153 = vcmask 253952
          %154 = vst.msk [vmem:[%s148] sm:$0x1] %vm153, 0.0
        $region32: #{tpu_custom_call.1} parent=23 // pred_fallthru
          _
        %v155 = vld [vmem:[%s130] sm:$0xff]
        %v156 = vmul.f32 %v155, %v155
        %vm157 = vcmask 261120
        %v158 = vsel %vm157, %v156, 0.0
        %v159 = vrot.slane %v158, 4
        %v160 = vadd.f32 %v158, %v159
        %v161 = vrot.slane %v160, 2
        %v162 = vadd.f32 %v160, %v161
        %v163 = vrot.slane %v162, 1
        %v164 = vadd.f32 %v162, %v163
        %v165 = vld [vmem:[%s148] sm:$0x1]
        %v166 = vadd.f32 %v165, %v164
        %vm167 = vcmask 253952
        %168 = vst.msk [vmem:[%s148] sm:$0x1] %vm167, %v166
        %p169 = scmp.eq.s32.totalorder %s23, 1
        // Predicated region
        $region33: #{tpu_custom_call.1} parent=23 // pred_check
          %p170 = pneg %p169
        $region34: #{tpu_custom_call.1} parent=23 // pred_check_branch
          %172 = sbr.rel (%p170) target = $region36
        $region35: #{tpu_custom_call.1} parent=23 // pred_region
          %v173 = vld [vmem:[%s148] sm:$0x1]
          %v174 = vrsqrt.pop %v173
          %v175 = vmul.f32 %v174, %v173
          %v176 = vmul.f32 %v175, %v174
          %v177 = vmul.f32 0.5, %v176
          %v178 = vsub.f32 1.5, %v177
          %v179 = vmul.f32 %v174, %v178
          %v180 = vmul.f32 %v173, %v179
          %vm181 = vcmp.eq.f32.partialorder %v173, inf
          %v182 = vsel %vm181, %v173, %v180
          %vm183 = vcmp.eq.f32.partialorder %v173, 0.0
          %v184 = vand.u32 %v173, 2147483648
          %v185 = vsel %vm183, %v184, %v182
          %v186 = vsel %vm167, %v185, 0.0
          %187 = vadd.xlane.f32.xlu0 %v186
          %v188 = vpop.xlane.xlu0 %187
          %v189 = vrcp.pop 32.0
          %v190 = vmul.f32 32.0, %v189
          %v191 = vsub.f32 1.0, %v190
          %v192 = vmul.f32 %v189, %v191
          %v193 = vadd.f32 %v189, %v192
          %vm194 = vweird.f32 %v189
          %v195 = vsel %vm194, %v189, %v193
          %v196 = vmul.f32 %v188, %v195
          %v197 = vadd.f32 %v196, 1e-06
          %v198 = vrcp.pop %v197
          %v199 = vmul.f32 %v197, %v198
          %v200 = vsub.f32 1.0, %v199
          %v201 = vmul.f32 %v198, %v200
          %v202 = vadd.f32 %v198, %v201
          %vm203 = vweird.f32 %v197
          %vm204 = vweird.f32 %v198
          %vm205 = vmor %vm203, %vm204
          %v206 = vsel %vm205, %v198, %v202
          %v207 = vand.u32 2147483647, %v197
          %vm208 = vcmp.eq.f32.partialorder %v207, 8.507059e+37
          %v209 = vand.u32 %v197, 2147483648
          %v210 = vor.u32 1.1754944e-38, %v209
          %v211 = vsel %vm208, %v210, %v206
          %v212 = vmul.f32 %v185, %v211
          %213 = vst.msk [vmem:[%s148] sm:$0x1] %vm167, %v212
        $region36: #{tpu_custom_call.1} parent=23 // pred_fallthru
          _
        %s214 = sand.u32 %s66, 1
        %s215 = scalar_lea.sflag [#allocation4], %s214
        %s216 = sand.u32 %s66, 1
        %s217 = scalar_lea.vmem [#allocation5], %s216
        // Predicated region
        $region37: #{tpu_custom_call.1} parent=23 // pred_check
          %p218 = pneg %p76
        $region38: #{tpu_custom_call.1} parent=23 // pred_check_branch
          %220 = sbr.rel (%p218) target = $region40
        $region39: #{tpu_custom_call.1} parent=23 // pred_region
          %222 = vsyncadd %s215, 0
          %s223 = scalar_lea.hbm %s1, %s22
          %s225 = sshll.u32 %s217, 4
          %s226 = int_to_ptr.vmem [resolvable:$true] %s225
          %s227 = sshll.u32 %s223, 4
          %s228 = int_to_ptr.hbm [resolvable:$true] %s227
          %230 = dma.vmem_to_hbm [thread:$0]  %s226, 16, %s228, %s215
        $region40: #{tpu_custom_call.1} parent=23 // pred_fallthru
          _
      $region24: #{tpu_custom_call.1} parent=5 // pred_fallthru
        _
      %p231 = scmp.le.s32.totalorder 2, %s13
      // Predicated region
      $region41: #{tpu_custom_call.1} parent=5 // pred_check
        %p232 = pneg %p231
      $region42: #{tpu_custom_call.1} parent=5 // pred_check_branch
        %234 = sbr.rel (%p232) target = $region44
      $region43: #{tpu_custom_call.1} parent=5 // pred_region
        %s235 = ssub.s32 %s13, 2
        // Predicated region
        $region45: #{tpu_custom_call.1} parent=43 // pred_check
          %p236 = pneg %p82
        $region46: #{tpu_custom_call.1} parent=43 // pred_check_branch
          %238 = sbr.rel (%p236) target = $region48
        $region47: #{tpu_custom_call.1} parent=43 // pred_region
          %s239 = sand.u32 %s67, 1
          %s240 = scalar_lea.sflag [#allocation4], %s239
          %s241 = sand.u32 %s67, 1
          %s242 = scalar_lea.vmem [#allocation5], %s241
          %244 = dma.done %s240, 16
        $region48: #{tpu_custom_call.1} parent=43 // pred_fallthru
          _
      $region44: #{tpu_custom_call.1} parent=5 // pred_fallthru
        _
    $region6: #{tpu_custom_call.1} parent=1 // loop_footer
      %s17 = sadd.s32 1, %s13
    $region7: #{tpu_custom_call.1} parent=1 // loop_footer_branch
      %12 = sbr.rel target = $region3
    $region8: #{tpu_custom_call.1} parent=1 // loop_exit
      _
    %245 = vsyncpa [#allocation3], 1
    %s246 = scalar_lea.sflag [#allocation3], 1
    %247 = vsyncpa %s246, 1
    %248 = vsyncpa [#allocation4], 1
    %s249 = scalar_lea.sflag [#allocation4], 1
    %250 = vsyncpa %s249, 1

</llo_original>
